<compile_context>
chip_gen: v5e
topology: v5e:2x2
jax: 0.10.0
libtpu: 0.0.40
codegen_flags: <defaults>
</compile_context>

<pallas_src>
import jax
import jax.numpy as jnp
from jax import lax
from jax.experimental import pallas as pl
from jax.experimental.pallas import tpu as pltpu


def _round_up(x: int, m: int) -> int:
    return ((x + m - 1) // m) * m


def logicnet_kernel(x_ref, w1_ref, b1_ref, w2_ref, b2_ref, out_ref):
    # Layer 1: hT = tanh(W1 @ xT + b1), shape (H, TB); batch rows live on lanes.
    # x_ref: (TB, Din), w1_ref: (H, Din) (torch layout) -> contract both minor dims.
    ht = lax.dot_general(
        w1_ref[...], x_ref[...],
        dimension_numbers=(((1,), (1,)), ((), ())),
        preferred_element_type=jnp.float32)
    ht = jnp.tanh(ht + b1_ref[...])               # b1: (H, 1), broadcast over lanes

    # Layer 2: yT = W2 @ hT + b2, shape (Dout, TB) -> lane-dense store.
    yt = jnp.dot(w2_ref[...], ht, preferred_element_type=jnp.float32)
    out_ref[...] = yt + b2_ref[...]               # b2: (Dout, 1), broadcast over lanes


def _choose_tile(batch: int, block_b: int) -> int:
    # Multi-tile case: tile must be a multiple of 128 so the transposed output
    # block keeps a 128-lane-aligned batch axis; aim for >= 4 grid steps when the
    # batch is large enough (feeds both TensorCores on v7x).
    tb = min(_round_up(max(block_b, 128), 128),
             _round_up(max(-(-batch // 4), 128), 128))
    if batch <= tb:
        return batch        # single tile whose block dims equal the array dims
    return tb


def logicnet_forward(x, w1, b1, w2, b2, *, block_b=8192):
    """x: [B, Din].  PyTorch nn.Linear layout: w1: [H, Din], b1: [H],
    w2: [Dout, H], b2: [Dout].  Returns [B, Dout] float32."""
    B, Din = x.shape
    H = w1.shape[0]
    Dout = w2.shape[0]

    # Tiny parameter reshapes/casts only (no pass over x).
    xf = x.astype(jnp.float32)
    w1f = w1.astype(jnp.float32)
    w2f = w2.astype(jnp.float32)
    b1f = b1.astype(jnp.float32).reshape(H, 1)
    b2f = b2.astype(jnp.float32).reshape(Dout, 1)

    tb = _choose_tile(B, block_b)
    grid = (-(-B // tb),)                          # ceil(B / tb); last block masked

    out_t = pl.pallas_call(
        logicnet_kernel,
        out_shape=jax.ShapeDtypeStruct((Dout, B), jnp.float32),
        grid=grid,
        in_specs=[
            pl.BlockSpec((tb, Din), lambda i: (i, 0)),   # x: streamed per batch tile
            pl.BlockSpec((H, Din), lambda i: (0, 0)),    # W1: resident in VMEM
            pl.BlockSpec((H, 1), lambda i: (0, 0)),      # b1: resident
            pl.BlockSpec((Dout, H), lambda i: (0, 0)),   # W2: resident
            pl.BlockSpec((Dout, 1), lambda i: (0, 0)),   # b2: resident
        ],
        out_specs=pl.BlockSpec((Dout, tb), lambda i: (0, i)),  # lane-dense writeback
        compiler_params=pltpu.CompilerParams(
            dimension_semantics=("parallel",),     # megacore split on v7x
            vmem_limit_bytes=48 * 1024 * 1024,     # lane-padded x tile ~512 B/row
        ),
    )(xf, w1f, b1f, w2f, b2f)

    # (Dout, B) -> (B, Dout); tiny compared to the x stream.
    return out_t.T


def logicnet_reference(x, w1, b1, w2, b2):
    # Plain f32 reference matching the PyTorch module.
    h = jnp.tanh(x @ w1.T + b1.reshape(1, -1))
    return h @ w2.T + b2.reshape(1, -1)


if __name__ == "__main__":
    # Shapes implied by the module: x: [batch, inputdim].
    batch, inputdim, hiddendim, outputdim = 8, 16, 32, 4

    key = jax.random.PRNGKey(0)
    kx, kw1, kb1, kw2, kb2 = jax.random.split(key, 5)

    x = jax.random.normal(kx, (batch, inputdim), dtype=jnp.float32)

    # PyTorch-style uniform init in the torch nn.Linear layout (W: [out, in]).
    bound1 = 1.0 / (inputdim ** 0.5)
    w1 = jax.random.uniform(kw1, (hiddendim, inputdim), jnp.float32, -bound1, bound1)
    b1 = jax.random.uniform(kb1, (hiddendim,), jnp.float32, -bound1, bound1)
    bound2 = 1.0 / (hiddendim ** 0.5)
    w2 = jax.random.uniform(kw2, (outputdim, hiddendim), jnp.float32, -bound2, bound2)
    b2 = jax.random.uniform(kb2, (outputdim,), jnp.float32, -bound2, bound2)

    # Small-shape run (single exact tile, blocks equal array dims).
    out = jax.block_until_ready(logicnet_forward(x, w1, b1, w2, b2))
    ref = logicnet_reference(x, w1, b1, w2, b2)
    assert out.shape == (batch, outputdim)
    assert jnp.allclose(out, ref, atol=1e-2, rtol=1e-2), "mismatch vs reference (small)"

    # Ragged multi-tile batch: exercises grid=ceil(B/tb) with a masked
    # overhanging last block and the lane-dense transposed writeback.
    big = 300
    xb = jax.random.normal(jax.random.PRNGKey(1), (big, inputdim), jnp.float32)
    out_b = jax.block_until_ready(logicnet_forward(xb, w1, b1, w2, b2))
    ref_b = logicnet_reference(xb, w1, b1, w2, b2)
    assert out_b.shape == (big, outputdim)
    assert jnp.allclose(out_b, ref_b, atol=1e-2, rtol=1e-2), "mismatch vs reference (ragged)"

    # Larger ragged batch: >=4 grid steps with the default tile policy.
    huge = 6000
    xh = jax.random.normal(jax.random.PRNGKey(2), (huge, inputdim), jnp.float32)
    out_h = jax.block_until_ready(logicnet_forward(xh, w1, b1, w2, b2))
    ref_h = logicnet_reference(xh, w1, b1, w2, b2)
    assert out_h.shape == (huge, outputdim)
    assert jnp.allclose(out_h, ref_h, atol=1e-2, rtol=1e-2), "mismatch vs reference (multi-tile)"

    print("KERNEL_OK")
</pallas_src>

<mosaic_0001>
module attributes {stable_mosaic.version = 11 : i64} {
  func.func @logicnet_kernel(%arg0: i32, %arg1: memref<8x16xf32, #tpu.memory_space<vmem>>, %arg2: memref<32x16xf32, #tpu.memory_space<vmem>>, %arg3: memref<32x1xf32, #tpu.memory_space<vmem>>, %arg4: memref<4x32xf32, #tpu.memory_space<vmem>>, %arg5: memref<4x1xf32, #tpu.memory_space<vmem>>, %arg6: memref<4x8xf32, #tpu.memory_space<vmem>>) attributes {dimension_semantics = [#tpu.dimension_semantics<parallel>], iteration_bounds = array<i64: 1>, scalar_prefetch = 0 : i64, scratch_operands = 0 : i64, tpu.core_type = #tpu.core_type<tc>, window_params = [{transform_indices = @transform_0, window_bounds = array<i64: 8, 16>}, {pipeline_mode = #tpu.pipeline_mode<synchronous>, transform_indices = @transform_1, window_bounds = array<i64: 32, 16>}, {pipeline_mode = #tpu.pipeline_mode<synchronous>, transform_indices = @transform_2, window_bounds = array<i64: 32, 1>}, {pipeline_mode = #tpu.pipeline_mode<synchronous>, transform_indices = @transform_3, window_bounds = array<i64: 4, 32>}, {pipeline_mode = #tpu.pipeline_mode<synchronous>, transform_indices = @transform_4, window_bounds = array<i64: 4, 1>}, {transform_indices = @transform_5, window_bounds = array<i64: 4, 8>}]} {
    %c0 = arith.constant 0 : index
    %c0_0 = arith.constant 0 : index
    %0 = vector.load %arg2[%c0, %c0_0] : memref<32x16xf32, #tpu.memory_space<vmem>>, vector<32x16xf32>
    %c0_1 = arith.constant 0 : index
    %c0_2 = arith.constant 0 : index
    %1 = vector.load %arg1[%c0_1, %c0_2] : memref<8x16xf32, #tpu.memory_space<vmem>>, vector<8x16xf32>
    %cst = arith.constant dense<0.000000e+00> : vector<32x8xf32>
    %2 = tpu.matmul %0, %1, %cst {dimension_numbers = #tpu.dot_dimension_numbers<[1], [1], [0], [0], [0, 0, 1, 0], [], []>} : vector<32x16xf32>, vector<8x16xf32>, vector<32x8xf32> -> vector<32x8xf32>
    %c0_3 = arith.constant 0 : index
    %c0_4 = arith.constant 0 : index
    %3 = vector.load %arg3[%c0_3, %c0_4] : memref<32x1xf32, #tpu.memory_space<vmem>>, vector<32x1xf32>
    %4 = vector.broadcast %3 : vector<32x1xf32> to vector<32x8xf32>
    %5 = arith.addf %2, %4 : vector<32x8xf32>
    %6 = math.tanh %5 : vector<32x8xf32>
    %c0_5 = arith.constant 0 : index
    %c0_6 = arith.constant 0 : index
    %7 = vector.load %arg4[%c0_5, %c0_6] : memref<4x32xf32, #tpu.memory_space<vmem>>, vector<4x32xf32>
    %cst_7 = arith.constant dense<0.000000e+00> : vector<4x8xf32>
    %8 = tpu.matmul %7, %6, %cst_7 {dimension_numbers = #tpu.dot_dimension_numbers<[1], [0], [0], [1], [0, 0, 1, 1], [], []>} : vector<4x32xf32>, vector<32x8xf32>, vector<4x8xf32> -> vector<4x8xf32>
    %c0_8 = arith.constant 0 : index
    %c0_9 = arith.constant 0 : index
    %9 = vector.load %arg5[%c0_8, %c0_9] : memref<4x1xf32, #tpu.memory_space<vmem>>, vector<4x1xf32>
    %10 = vector.broadcast %9 : vector<4x1xf32> to vector<4x8xf32>
    %11 = arith.addf %8, %10 : vector<4x8xf32>
    %c0_10 = arith.constant 0 : index
    %c0_11 = arith.constant 0 : index
    %12 = vector.load %arg6[%c0_10, %c0_11] : memref<4x8xf32, #tpu.memory_space<vmem>>, vector<4x8xf32>
    tpu.vector_store %arg6[%c0_10, %c0_11], %11 {strides = array<i32>} : memref<4x8xf32, #tpu.memory_space<vmem>>, vector<4x8xf32>,
    return
  }
  func.func @transform_0(%arg0: i32) -> (i32, i32) {
    %c0_i32 = arith.constant 0 : i32
    %c0_i32_0 = arith.constant 0 : i32
    return %arg0, %c0_i32 : i32, i32
  }
  func.func @transform_1(%arg0: i32) -> (i32, i32) {
    %c0_i32 = arith.constant 0 : i32
    %c0_i32_0 = arith.constant 0 : i32
    %c0_i32_1 = arith.constant 0 : i32
    return %c0_i32, %c0_i32_0 : i32, i32
  }
  func.func @transform_2(%arg0: i32) -> (i32, i32) {
    %c0_i32 = arith.constant 0 : i32
    %c0_i32_0 = arith.constant 0 : i32
    %c0_i32_1 = arith.constant 0 : i32
    return %c0_i32, %c0_i32_0 : i32, i32
  }
  func.func @transform_3(%arg0: i32) -> (i32, i32) {
    %c0_i32 = arith.constant 0 : i32
    %c0_i32_0 = arith.constant 0 : i32
    %c0_i32_1 = arith.constant 0 : i32
    return %c0_i32, %c0_i32_0 : i32, i32
  }
  func.func @transform_4(%arg0: i32) -> (i32, i32) {
    %c0_i32 = arith.constant 0 : i32
    %c0_i32_0 = arith.constant 0 : i32
    %c0_i32_1 = arith.constant 0 : i32
    return %c0_i32, %c0_i32_0 : i32, i32
  }
  func.func @transform_5(%arg0: i32) -> (i32, i32) {
    %c0_i32 = arith.constant 0 : i32
    %c0_i32_0 = arith.constant 0 : i32
    return %c0_i32, %arg0 : i32, i32
  }
}

</mosaic_0001>

<llo_original>
// kernel: tpu_custom_call.1
$region0: #{tpu_custom_call.1}
  #allocation0 [shape = 'u32[]', space=smem, size = 0x4, offset = 0x4, fixed_abs, tag = 'smem constant byte address 0x4 - core index']
  #allocation1 [shape = 'u32[72,128]{1,0:T(1,128)}', space=vmem, size = 0x9000, scoped, tag = 'internal scratch']
  %s0 = inlined_call_operand.vmem [shape: f32[8,16], index: 0, kind: input, shape index: {}]
  %s1 = inlined_call_operand.vmem [shape: f32[32,16], index: 1, kind: input, shape index: {}]
  %s2 = inlined_call_operand.vmem [shape: f32[32,1], index: 2, kind: input, shape index: {}]
  %s3 = inlined_call_operand.vmem [shape: f32[4,32], index: 3, kind: input, shape index: {}]
  %s4 = inlined_call_operand.vmem [shape: f32[4,1], index: 4, kind: input, shape index: {}]
  %s5 = inlined_call_operand.hbm [shape: f32[4,8], index: 5, kind: output, shape index: {}]
  %s6 = sld [smem:[#allocation0]]
  $region30: #{tpu_custom_call.1} parent=0
    _
  %s8 = ssub.s32 1, %s6
  %s9 = scalar_select 0, %s8, %s6
  $region1: #{tpu_custom_call.1} parent=0
    #allocation2 [shape = 'u8[2048]{0}', space=vmem, size = 0x800, scoped, tag = 'output window, operand 0, single buffered']
    #allocation3 [shape = 's32[1]{0}', space=sflag, size = 0x4, scoped, tag = 'scoped memory for tpu_custom_call.1']
    %10 = vsyncpa [#allocation3], 0
    // Predicated region
    $region2: #{tpu_custom_call.1} parent=1 // pred_check
      _
    $region3: #{tpu_custom_call.1} parent=1 // pred_check_branch
      %12 = sbr.rel (0) target = $region5
    $region4: #{tpu_custom_call.1} parent=1 // pred_region
      _
    $region5: #{tpu_custom_call.1} parent=1 // pred_fallthru
      _
    // Predicated region
    $region6: #{tpu_custom_call.1} parent=1 // pred_check
      _
    $region7: #{tpu_custom_call.1} parent=1 // pred_check_branch
      %14 = sbr.rel (0) target = $region9
    $region8: #{tpu_custom_call.1} parent=1 // pred_region
      _
    $region9: #{tpu_custom_call.1} parent=1 // pred_fallthru
      _
    // Predicated region
    $region10: #{tpu_custom_call.1} parent=1 // pred_check
      _
    $region11: #{tpu_custom_call.1} parent=1 // pred_check_branch
      %16 = sbr.rel (0) target = $region13
    $region12: #{tpu_custom_call.1} parent=1 // pred_region
      _
    $region13: #{tpu_custom_call.1} parent=1 // pred_fallthru
      _
    // Predicated region
    $region14: #{tpu_custom_call.1} parent=1 // pred_check
      _
    $region15: #{tpu_custom_call.1} parent=1 // pred_check_branch
      %18 = sbr.rel (0) target = $region17
    $region16: #{tpu_custom_call.1} parent=1 // pred_region
      _
    $region17: #{tpu_custom_call.1} parent=1 // pred_fallthru
      _
    // Predicated region
    $region18: #{tpu_custom_call.1} parent=1 // pred_check
      _
    $region19: #{tpu_custom_call.1} parent=1 // pred_check_branch
      %20 = sbr.rel (0) target = $region21
    $region20: #{tpu_custom_call.1} parent=1 // pred_region
      _
    $region21: #{tpu_custom_call.1} parent=1 // pred_fallthru
      _
    %v21 = vld [vmem:[%s1] sm:$0xff]
    %v22 = vld [vmem:[%s1 + $0x8] sm:$0xff]
    %v23 = vld [vmem:[%s1 + $0x10] sm:$0xff]
    %v24 = vld [vmem:[%s1 + $0x18] sm:$0xff]
    %v25 = vld [vmem:[%s0] sm:$0xff]
    %v26 = vld [vmem:[%s2] sm:$0xff]
    %v27 = vld [vmem:[%s2 + $0x8] sm:$0xff]
    %v28 = vld [vmem:[%s2 + $0x10] sm:$0xff]
    %v29 = vld [vmem:[%s2 + $0x18] sm:$0xff]
    %31 = vset.pattern.permute.xlu0 0
    %32 = vperm.xlu0 %31, %v26
    %v33 = vpop.permute.xlu0 %32
    %36 = vset.pattern.permute.xlu0 0
    %37 = vperm.xlu0 %36, %v27
    %v38 = vpop.permute.xlu0 %37
    %41 = vset.pattern.permute.xlu0 0
    %42 = vperm.xlu0 %41, %v28
    %v43 = vpop.permute.xlu0 %42
    %46 = vset.pattern.permute.xlu0 0
    %47 = vperm.xlu0 %46, %v29
    %v48 = vpop.permute.xlu0 %47
    %vm50 = vcmask 130048
    %v52 = vsel %vm50, %v21, 0
    %v55 = vsel %vm50, %v22, 0
    %v58 = vsel %vm50, %v23, 0
    %v61 = vsel %vm50, %v24, 0
    %v64 = vsel %vm50, %v25, 0
    %66 = vmatpush.xpose.msra.mxu0 0.0
    %67 = vmatpush.xpose.msra.mxu0 0.0
    %68 = vmatpush.xpose.msra.mxu0 0.0
    %69 = vmatpush.xpose.msra.mxu0 0.0
    %70 = vmatpush.xpose.msra.mxu0 0.0
    %71 = vmatpush.xpose.msra.mxu0 0.0
    %72 = vmatpush.xpose.msra.mxu0 0.0
    %73 = vmatpush.xpose.msra.mxu0 0.0
    %74 = vmatpush.xpose.msra.mxu0 0.0
    %75 = vmatpush.xpose.msra.mxu0 0.0
    %76 = vmatpush.xpose.msra.mxu0 0.0
    %77 = vmatpush.xpose.msra.mxu0 0.0
    %78 = vmatpush.xpose.msra.mxu0 0.0
    %79 = vmatpush.xpose.msra.mxu0 0.0
    %80 = vmatpush.xpose.msra.mxu0 0.0
    %81 = vmatpush.xpose.msra.mxu0 %v64
    %82 = vmatmul.f32.gmra.mxu0 %v52
    %v83 = vpop.f32.mrf.mxu0
    %v84 = vadd.f32 %v33, %v83
    %85 = vmatmul.f32.gmra.mxu0 %v55
    %v86 = vpop.f32.mrf.mxu0
    %v87 = vadd.f32 %v38, %v86
    %88 = vmatmul.f32.gmra.mxu0 %v58
    %v89 = vpop.f32.mrf.mxu0
    %v90 = vadd.f32 %v43, %v89
    %91 = vmatmul.f32.gmra.mxu0 %v61
    %v92 = vpop.f32.mrf.mxu0
    %v93 = vadd.f32 %v48, %v92
    %94 = vdwg.mxu0
    %v95 = vtanh.pop %v84
    %v96 = vtanh.pop %v87
    %v97 = vtanh.pop %v90
    %v98 = vtanh.pop %v93
    %v99 = vld [vmem:[%s3] sm:$0xf]
    %v100 = vld [vmem:[%s4] sm:$0xf]
    %102 = vset.pattern.permute.xlu0 0
    %103 = vperm.xlu0 %102, %v100
    %v104 = vpop.permute.xlu0 %103
    %vm106 = vcmask 261120
    %v108 = vsel %vm106, %v99, 0
    %110 = vmatpush.msra.mxu0 0.0
    %111 = vmatpush.msra.mxu0 0.0
    %112 = vmatpush.msra.mxu0 0.0
    %113 = vmatpush.msra.mxu0 0.0
    %114 = vmatpush.msra.mxu0 0.0
    %115 = vmatpush.msra.mxu0 0.0
    %116 = vmatpush.msra.mxu0 0.0
    %117 = vmatpush.msra.mxu0 0.0
    %118 = vmatpush.msra.mxu0 0.0
    %119 = vmatpush.msra.mxu0 0.0
    %120 = vmatpush.msra.mxu0 0.0
    %121 = vmatpush.msra.mxu0 0.0
    %122 = vmatpush.msra.mxu0 %v98
    %123 = vmatpush.msra.mxu0 %v97
    %124 = vmatpush.msra.mxu0 %v96
    %125 = vmatpush.msra.mxu0 %v95
    %126 = vmatmul.f32.gmra.mxu0 %v108
    %v127 = vpop.f32.mrf.mxu0
    %v128 = vadd.f32 %v104, %v127
    %129 = vdwg.mxu0
    %vm130 = vcmask 60416
    %131 = vst.msk [vmem:[#allocation2] sm:$0xf] %vm130, %v128
    // Predicated region
    $region22: #{tpu_custom_call.1} parent=1 // pred_check
      _
    $region23: #{tpu_custom_call.1} parent=1 // pred_check_branch
      %133 = sbr.rel (0) target = $region25
    $region24: #{tpu_custom_call.1} parent=1 // pred_region
      %135 = vsyncadd [#allocation3], 0
      %s137 = sshll.u32 [#allocation2], 4
      %s138 = int_to_ptr.vmem [resolvable:$true] %s137
      %s139 = sshll.u32 %s5, 4
      %s140 = int_to_ptr.hbm [resolvable:$true] %s139
      %142 = dma.vmem_to_hbm [thread:$0]  %s138, 64, %s140, [#allocation3]
    $region25: #{tpu_custom_call.1} parent=1 // pred_fallthru
      _
    // Predicated region
    $region26: #{tpu_custom_call.1} parent=1 // pred_check
      _
    $region27: #{tpu_custom_call.1} parent=1 // pred_check_branch
      %144 = sbr.rel (0) target = $region29
    $region28: #{tpu_custom_call.1} parent=1 // pred_region
      %146 = dma.done [#allocation3], 64
    $region29: #{tpu_custom_call.1} parent=1 // pred_fallthru
      _
    %147 = vsyncpa [#allocation3], 1

</llo_original>
